<compile_context>
chip_gen: v7x
topology: tpu7x:2x2x1
jax: 0.10.0
libtpu: 0.0.40
codegen_flags: <defaults>
</compile_context>

<pallas_src>
import functools
import sys

import jax
import jax.numpy as jnp
from jax import lax
from jax.experimental import pallas as pl
from jax.experimental.pallas import tpu as pltpu

TEMPERATURE = 10.0                      # module default
EPS = float(sys.float_info.epsilon)     # matches sys.float_info.epsilon in the spec


def mvc_loss_kernel(x_ref, xt_ref, o_ref, *, bn, seq):
    # x_ref : (bn*seq, k)  view-1 logits (rows = flattened batch*seq)
    # xt_ref: (bn*seq, k)  view-2 logits
    # o_ref : (1, 1)       scalar loss
    x = x_ref[...]
    xt = xt_ref[...]

    # ---- stack both views along the sublane axis: (2*bn*seq, k) ----
    xs = jnp.concatenate([x, xt], axis=0)

    # ---- block-diagonal averaging matrix generated in-register (no input DMA) ----
    two_bn = 2 * bn
    rows = lax.broadcasted_iota(jnp.int32, (two_bn, two_bn * seq), 0)
    cols = lax.broadcasted_iota(jnp.int32, (two_bn, two_bn * seq), 1)
    start = rows * seq
    a = jnp.where((cols >= start) & (cols < start + seq),
                  jnp.float32(1.0 / seq), jnp.float32(0.0))      # (2*bn, 2*bn*seq)

    # ---- fused view-mean for both views: ONE MXU pass, contraction = 2*bn*seq ----
    means = jnp.dot(a, xs, preferred_element_type=jnp.float32)   # (2*bn, k), f32

    # ---- ONE softmax over the class axis for both views at once ----
    z = means - jnp.max(means, axis=-1, keepdims=True)
    e = jnp.exp(z)                                               # EUP
    denom = jnp.sum(e, axis=-1, keepdims=True)                   # (2*bn, 1)
    probs = e * pl.reciprocal(denom, approx=False)               # 1 div + bcast muls

    p = probs[:bn]     # (bn, k)  — 8-sublane-aligned slice
    pt = probs[bn:]    # (bn, k)

    # ---- joint distribution: contract over the batch dim directly (no p.T relayout).
    # Symmetrize with a second small MXU pass instead of an XLU transpose.
    dims = (((0,), (0,)), ((), ()))
    pij_a = lax.dot_general(p, pt, dims, preferred_element_type=jnp.float32)  # (k, k)
    pij_b = lax.dot_general(pt, p, dims, preferred_element_type=jnp.float32)  # = pij_a.T
    pij = 0.5 * (pij_a + pij_b)

    # normalize to a probability table (staged reductions -> (1,1))
    total = jnp.sum(jnp.sum(pij, axis=1, keepdims=True), axis=0, keepdims=True)
    pij = pij * pl.reciprocal(total, approx=False)

    # pij is symmetric => p_j == p_i^T; only one lane-reduction marginal needed.
    p_i = jnp.sum(pij, axis=1, keepdims=True)                    # (k, 1)

    # clamp at machine epsilon (equivalent to torch.where(x < EPS, EPS, x) here)
    pij_c = jnp.maximum(pij, EPS)
    p_i_c = jnp.maximum(p_i, EPS)

    # loss = -sum pij*log pij + 2*T*sum p_i*log p_i   (algebraic rewrite via symmetry)
    ent_joint = jnp.sum(jnp.sum(pij_c * jnp.log(pij_c), axis=1, keepdims=True),
                        axis=0, keepdims=True)                   # (1, 1)
    ent_marg = jnp.sum(p_i_c * jnp.log(p_i_c), axis=0, keepdims=True)  # (1, 1)
    loss = -ent_joint + (2.0 * TEMPERATURE) * ent_marg           # (1, 1)
    o_ref[...] = loss.astype(o_ref.dtype)


@jax.jit
def multi_view_contrastive_loss(x_out, x_tf_out):
    # Accept (bn, k) or (bn, seq, k) exactly like the PyTorch forward.
    if x_out.ndim == 2:
        x_out = x_out[:, None, :]
        x_tf_out = x_tf_out[:, None, :]
    bn, seq, k = x_out.shape

    x2d = x_out.reshape(bn * seq, k)
    xt2d = x_tf_out.reshape(bn * seq, k)

    kernel = functools.partial(mvc_loss_kernel, bn=bn, seq=seq)

    # Advisory cost hint so XLA schedules this tiny, latency-bound call sensibly.
    cost = pl.CostEstimate(
        flops=(2 * (2 * bn) * (2 * bn * seq) * k    # fused mean matmul
               + 2 * (2 * bn * k * k)               # two joint dot_generals
               + 12 * k * k),                       # elementwise tail
        transcendentals=2 * bn * k + k * k + k,     # exp + logs
        bytes_accessed=4 * (2 * bn * seq * k + 1),
    )

    out = pl.pallas_call(
        kernel,
        out_shape=jax.ShapeDtypeStruct((1, 1), jnp.float32),
        in_specs=[pl.BlockSpec(memory_space=pltpu.MemorySpace.VMEM)] * 2,
        out_specs=pl.BlockSpec(memory_space=pltpu.MemorySpace.VMEM),
        cost_estimate=cost,
    )(x2d, xt2d)
    return out[0, 0]


def _reference(x_out, x_tf_out):
    """Pure-JAX mirror of the PyTorch module for correctness checking."""
    if x_out.ndim == 3:
        x_out = x_out.mean(axis=1)
        x_tf_out = x_tf_out.mean(axis=1)
    p = jax.nn.softmax(x_out, axis=-1)
    pt = jax.nn.softmax(x_tf_out, axis=-1)
    pij = (p[:, :, None] * pt[:, None, :]).sum(axis=0)
    pij = (pij + pij.T) / 2.0
    pij = pij / pij.sum()
    p_i = pij.sum(axis=1)[:, None]
    p_j = pij.sum(axis=0)[None, :]
    pij = jnp.where(pij < EPS, EPS, pij)
    p_i = jnp.where(p_i < EPS, EPS, p_i)
    p_j = jnp.where(p_j < EPS, EPS, p_j)
    loss = -pij * (jnp.log(pij)
                   - TEMPERATURE * jnp.log(p_j)
                   - TEMPERATURE * jnp.log(p_i))
    return loss.sum()


if __name__ == "__main__":
    key = jax.random.PRNGKey(0)
    k1, k2 = jax.random.split(key)

    BN, SEQ, K = 8, 8, 32   # (batch, views/seq, classes) — small, module-consistent
    x_out = jax.random.normal(k1, (BN, SEQ, K), jnp.float32)
    x_tf_out = jax.random.normal(k2, (BN, SEQ, K), jnp.float32)

    loss = multi_view_contrastive_loss(x_out, x_tf_out)
    loss = jax.block_until_ready(loss)

    ref = _reference(x_out, x_tf_out)
    assert loss.shape == ()
    assert jnp.allclose(loss, ref, rtol=1e-4, atol=1e-3), (float(loss), float(ref))

    print("KERNEL_OK")
</pallas_src>

<mosaic_0001>
module attributes {stable_mosaic.version = 11 : i64} {
  func.func @mvc_loss_kernel(%arg0: memref<64x32xf32, #tpu.memory_space<vmem>>, %arg1: memref<64x32xf32, #tpu.memory_space<vmem>>, %arg2: memref<1x1xf32, #tpu.memory_space<vmem>>) attributes {dimension_semantics = [], scalar_prefetch = 0 : i64, scratch_operands = 0 : i64, tpu.core_type = #tpu.core_type<tc>} {
    %c0 = arith.constant 0 : index
    %c0_0 = arith.constant 0 : index
    %0 = vector.load %arg0[%c0, %c0_0] : memref<64x32xf32, #tpu.memory_space<vmem>>, vector<64x32xf32>
    %c0_1 = arith.constant 0 : index
    %c0_2 = arith.constant 0 : index
    %1 = vector.load %arg1[%c0_1, %c0_2] : memref<64x32xf32, #tpu.memory_space<vmem>>, vector<64x32xf32>
    %2 = tpu.concatenate %0, %1 in 0 : vector<64x32xf32>, vector<64x32xf32> -> vector<128x32xf32>
    %3 = tpu.iota {dimensions = array<i32: 0>} : vector<16x128xi32>
    %4 = tpu.iota {dimensions = array<i32: 1>} : vector<16x128xi32>
    %c8_i32 = arith.constant 8 : i32
    %5 = vector.broadcast %c8_i32 : i32 to vector<16x128xi32>
    %6 = arith.muli %3, %5 : vector<16x128xi32>
    %7 = arith.cmpi sge, %4, %6 : vector<16x128xi32>
    %c8_i32_3 = arith.constant 8 : i32
    %8 = vector.broadcast %c8_i32_3 : i32 to vector<16x128xi32>
    %9 = arith.addi %6, %8 : vector<16x128xi32>
    %10 = arith.cmpi slt, %4, %9 : vector<16x128xi32>
    %11 = arith.andi %7, %10 : vector<16x128xi1>
    %cst = arith.constant 1.250000e-01 : f32
    %cst_4 = arith.constant 0.000000e+00 : f32
    %12 = vector.broadcast %cst : f32 to vector<16x128xf32>
    %13 = vector.broadcast %cst_4 : f32 to vector<16x128xf32>
    %14 = arith.select %11, %12, %13 : vector<16x128xi1>, vector<16x128xf32>
    %cst_5 = arith.constant dense<0.000000e+00> : vector<16x32xf32>
    %15 = tpu.matmul %14, %2, %cst_5 {dimension_numbers = #tpu.dot_dimension_numbers<[1], [0], [0], [1], [0, 0, 1, 1], [], []>} : vector<16x128xf32>, vector<128x32xf32>, vector<16x32xf32> -> vector<16x32xf32>
    %cst_6 = arith.constant dense<0xFF800000> : vector<16xf32>
    %16 = vector.multi_reduction <maximumf>, %15, %cst_6 [1] : vector<16x32xf32> to vector<16xf32>
    %17 = vector.shape_cast %16 : vector<16xf32> to vector<16x1xf32>
    %18 = vector.broadcast %17 : vector<16x1xf32> to vector<16x32xf32>
    %19 = arith.subf %15, %18 : vector<16x32xf32>
    %20 = math.exp %19 : vector<16x32xf32>
    %cst_7 = arith.constant dense<0.000000e+00> : vector<16xf32>
    %21 = vector.multi_reduction <add>, %20, %cst_7 [1] : vector<16x32xf32> to vector<16xf32>
    %22 = vector.shape_cast %21 : vector<16xf32> to vector<16x1xf32>
    %23 = tpu.reciprocal %22 : vector<16x1xf32> -> vector<16x1xf32>
    %24 = vector.broadcast %23 : vector<16x1xf32> to vector<16x32xf32>
    %25 = arith.mulf %20, %24 : vector<16x32xf32>
    %26 = vector.extract_strided_slice %25 {offsets = [0, 0], sizes = [8, 32], strides = [1, 1]} : vector<16x32xf32> to vector<8x32xf32>
    %27 = vector.extract_strided_slice %25 {offsets = [8, 0], sizes = [8, 32], strides = [1, 1]} : vector<16x32xf32> to vector<8x32xf32>
    %cst_8 = arith.constant dense<0.000000e+00> : vector<32x32xf32>
    %28 = tpu.matmul %26, %27, %cst_8 {dimension_numbers = #tpu.dot_dimension_numbers<[0], [0], [1], [1], [0, 1, 1, 1], [], []>} : vector<8x32xf32>, vector<8x32xf32>, vector<32x32xf32> -> vector<32x32xf32>
    %cst_9 = arith.constant dense<0.000000e+00> : vector<32x32xf32>
    %29 = tpu.matmul %27, %26, %cst_9 {dimension_numbers = #tpu.dot_dimension_numbers<[0], [0], [1], [1], [0, 1, 1, 1], [], []>} : vector<8x32xf32>, vector<8x32xf32>, vector<32x32xf32> -> vector<32x32xf32>
    %30 = arith.addf %28, %29 : vector<32x32xf32>
    %cst_10 = arith.constant 5.000000e-01 : f32
    %31 = vector.broadcast %cst_10 : f32 to vector<32x32xf32>
    %32 = arith.mulf %31, %30 : vector<32x32xf32>
    %cst_11 = arith.constant dense<0.000000e+00> : vector<32xf32>
    %33 = vector.multi_reduction <add>, %32, %cst_11 [1] : vector<32x32xf32> to vector<32xf32>
    %34 = vector.shape_cast %33 : vector<32xf32> to vector<32x1xf32>
    %cst_12 = arith.constant dense<0.000000e+00> : vector<1xf32>
    %35 = vector.multi_reduction <add>, %34, %cst_12 [0] : vector<32x1xf32> to vector<1xf32>
    %36 = vector.shape_cast %35 : vector<1xf32> to vector<1x1xf32>
    %37 = tpu.reciprocal %36 : vector<1x1xf32> -> vector<1x1xf32>
    %38 = vector.broadcast %37 : vector<1x1xf32> to vector<32x32xf32>
    %39 = arith.mulf %32, %38 : vector<32x32xf32>
    %cst_13 = arith.constant dense<0.000000e+00> : vector<32xf32>
    %40 = vector.multi_reduction <add>, %39, %cst_13 [1] : vector<32x32xf32> to vector<32xf32>
    %41 = vector.shape_cast %40 : vector<32xf32> to vector<32x1xf32>
    %cst_14 = arith.constant 2.22044605E-16 : f32
    %42 = vector.broadcast %cst_14 : f32 to vector<32x32xf32>
    %43 = arith.maximumf %39, %42 : vector<32x32xf32>
    %cst_15 = arith.constant 2.22044605E-16 : f32
    %44 = vector.broadcast %cst_15 : f32 to vector<32x1xf32>
    %45 = arith.maximumf %41, %44 : vector<32x1xf32>
    %46 = math.log %43 : vector<32x32xf32>
    %47 = arith.mulf %43, %46 : vector<32x32xf32>
    %cst_16 = arith.constant dense<0.000000e+00> : vector<32xf32>
    %48 = vector.multi_reduction <add>, %47, %cst_16 [1] : vector<32x32xf32> to vector<32xf32>
    %49 = vector.shape_cast %48 : vector<32xf32> to vector<32x1xf32>
    %cst_17 = arith.constant dense<0.000000e+00> : vector<1xf32>
    %50 = vector.multi_reduction <add>, %49, %cst_17 [0] : vector<32x1xf32> to vector<1xf32>
    %51 = vector.shape_cast %50 : vector<1xf32> to vector<1x1xf32>
    %52 = math.log %45 : vector<32x1xf32>
    %53 = arith.mulf %45, %52 : vector<32x1xf32>
    %cst_18 = arith.constant dense<0.000000e+00> : vector<1xf32>
    %54 = vector.multi_reduction <add>, %53, %cst_18 [0] : vector<32x1xf32> to vector<1xf32>
    %55 = vector.shape_cast %54 : vector<1xf32> to vector<1x1xf32>
    %cst_19 = arith.constant 0.000000e+00 : f32
    %56 = vector.broadcast %cst_19 : f32 to vector<1x1xf32>
    %57 = arith.subf %56, %51 : vector<1x1xf32>
    %cst_20 = arith.constant 2.000000e+01 : f32
    %58 = vector.broadcast %cst_20 : f32 to vector<1x1xf32>
    %59 = arith.mulf %58, %55 : vector<1x1xf32>
    %60 = arith.addf %57, %59 : vector<1x1xf32>
    %c0_21 = arith.constant 0 : index
    %c0_22 = arith.constant 0 : index
    %61 = vector.load %arg2[%c0_21, %c0_22] : memref<1x1xf32, #tpu.memory_space<vmem>>, vector<1x1xf32>
    tpu.vector_store %arg2[%c0_21, %c0_22], %60 {strides = array<i32>} : memref<1x1xf32, #tpu.memory_space<vmem>>, vector<1x1xf32>,
    return
  }
}

</mosaic_0001>

<llo_original>
// kernel: multi_view_contrastive_loss.1
$region0: #{multi_view_contrastive_loss.1}
  #allocation0 [shape = 'u32[]', space=smem, size = 0x4, offset = 0x4, fixed_abs, tag = 'smem constant byte address 0x4 - core index']
  #allocation1 [shape = 'u32[144,128]{1,0:T(1,128)}', space=vmem, size = 0x12000, scoped, tag = 'internal scratch']
  %s0 = inlined_call_operand.hbm [shape: f32[64,32], index: 0, kind: input, shape index: {}]
  %s1 = inlined_call_operand.hbm [shape: f32[64,32], index: 1, kind: input, shape index: {}]
  %s2 = inlined_call_operand.hbm [shape: f32[1,1], index: 2, kind: output, shape index: {}]
  %s3 = sld [smem:[#allocation0]]
  $region26: #{multi_view_contrastive_loss.1} parent=0
    _
  %s5 = ssub.s32 1, %s3
  %s6 = scalar_select 0, %s5, %s3
  $region1: #{multi_view_contrastive_loss.1} parent=0
    #allocation2 [shape = 'u8[32768]{0}', space=vmem, size = 0x8000, scoped, tag = 'input window, operand 0, single buffered']
    #allocation3 [shape = 's32[1]{0}', space=sflag, size = 0x4, scoped, tag = 'scoped memory for multi_view_contrastive_loss.1']
    #allocation4 [shape = 's32[1]{0}', space=sflag, size = 0x4, scoped, tag = 'scoped memory for multi_view_contrastive_loss.1']
    #allocation5 [shape = 'u8[32768]{0}', space=vmem, size = 0x8000, scoped, tag = 'input window, operand 1, single buffered']
    #allocation6 [shape = 's32[1]{0}', space=sflag, size = 0x4, scoped, tag = 'scoped memory for multi_view_contrastive_loss.1']
    #allocation7 [shape = 'u8[512]{0}', space=vmem, size = 0x400, scoped, tag = 'output window, operand 0, single buffered']
    %7 = vsyncpa [#allocation3], 0
    %8 = vsyncpa [#allocation6], 0
    %9 = vsyncpa [#allocation4], 0
    // Predicated region
    $region2: #{multi_view_contrastive_loss.1} parent=1 // pred_check
      _
    $region3: #{multi_view_contrastive_loss.1} parent=1 // pred_check_branch
      %11 = sbr.rel (0) target = $region5
    $region4: #{multi_view_contrastive_loss.1} parent=1 // pred_region
      %s13 = ssub.s32 1024, 1024
      %14 = vsyncadd [#allocation3], %s13
      %s15 = sshll.u32 [#allocation2], 4
      %s16 = int_to_ptr.vmem [resolvable:$true] %s15
      %21 = dma.hbm_to_vmem [thread:$0]  %s0, 1024, %s16, [#allocation3], 128, 128, 8
    $region5: #{multi_view_contrastive_loss.1} parent=1 // pred_fallthru
      _
    // Predicated region
    $region6: #{multi_view_contrastive_loss.1} parent=1 // pred_check
      _
    $region7: #{multi_view_contrastive_loss.1} parent=1 // pred_check_branch
      %23 = sbr.rel (0) target = $region9
    $region8: #{multi_view_contrastive_loss.1} parent=1 // pred_region
      %s25 = ssub.s32 1024, 1024
      %26 = vsyncadd [#allocation6], %s25
      %s27 = sshll.u32 [#allocation5], 4
      %s28 = int_to_ptr.vmem [resolvable:$true] %s27
      %33 = dma.hbm_to_vmem [thread:$0]  %s1, 1024, %s28, [#allocation6], 128, 128, 8
    $region9: #{multi_view_contrastive_loss.1} parent=1 // pred_fallthru
      _
    // Predicated region
    $region10: #{multi_view_contrastive_loss.1} parent=1 // pred_check
      _
    $region11: #{multi_view_contrastive_loss.1} parent=1 // pred_check_branch
      %35 = sbr.rel (0) target = $region13
    $region12: #{multi_view_contrastive_loss.1} parent=1 // pred_region
      %36 = dma.done [#allocation3], 1024
    $region13: #{multi_view_contrastive_loss.1} parent=1 // pred_fallthru
      _
    // Predicated region
    $region14: #{multi_view_contrastive_loss.1} parent=1 // pred_check
      _
    $region15: #{multi_view_contrastive_loss.1} parent=1 // pred_check_branch
      %38 = sbr.rel (0) target = $region17
    $region16: #{multi_view_contrastive_loss.1} parent=1 // pred_region
      %39 = dma.done [#allocation6], 1024
    $region17: #{multi_view_contrastive_loss.1} parent=1 // pred_fallthru
      _
    %v40 = vld [vmem:[#allocation2] sm:$0xff]
    %v41 = vld [vmem:[#allocation2 + $0x8] sm:$0xff]
    %v42 = vld [vmem:[#allocation2 + $0x10] sm:$0xff]
    %v43 = vld [vmem:[#allocation2 + $0x18] sm:$0xff]
    %v44 = vld [vmem:[#allocation2 + $0x20] sm:$0xff]
    %v45 = vld [vmem:[#allocation2 + $0x28] sm:$0xff]
    %v46 = vld [vmem:[#allocation2 + $0x30] sm:$0xff]
    %v47 = vld [vmem:[#allocation2 + $0x38] sm:$0xff]
    %v48 = vld [vmem:[#allocation5] sm:$0xff]
    %v49 = vld [vmem:[#allocation5 + $0x8] sm:$0xff]
    %v50 = vld [vmem:[#allocation5 + $0x10] sm:$0xff]
    %v51 = vld [vmem:[#allocation5 + $0x18] sm:$0xff]
    %v52 = vld [vmem:[#allocation5 + $0x20] sm:$0xff]
    %v53 = vld [vmem:[#allocation5 + $0x28] sm:$0xff]
    %v54 = vld [vmem:[#allocation5 + $0x30] sm:$0xff]
    %v55 = vld [vmem:[#allocation5 + $0x38] sm:$0xff]
    %v56 = vlaneseq
    %v57 = vshrl.u32 %v56, 7
    %v58 = vadd.s32 %v57, 8
    %v59 = vlaneseq
    %v60 = vand.u32 %v59, 127
    %v61 = vmul.u32 %v57, 8
    %v62 = vmul.u32 %v58, 8
    %vm63 = vcmp.ge.s32.totalorder %v60, %v61
    %vm64 = vcmp.ge.s32.totalorder %v60, %v62
    %v65 = vadd.s32 %v61, 8
    %v66 = vadd.s32 %v62, 8
    %vm67 = vcmp.lt.s32.totalorder %v60, %v65
    %vm68 = vcmp.lt.s32.totalorder %v60, %v66
    %vm69 = vmand %vm63, %vm67
    %vm70 = vmand %vm64, %vm68
    %v71 = vsel %vm69, 0.125, 0.0
    %v72 = vsel %vm70, 0.125, 0.0
    %73 = vmatprep.subr.mxu0 0.0
    %74 = vmatpush1.msra.mxu0 %v40
    %75 = vmatprep.subr.mxu0 0.0
    %76 = vmatpush1.msra.mxu0 %v41
    %77 = vmatprep.subr.mxu0 0.0
    %78 = vmatpush1.msra.mxu0 %v42
    %79 = vmatprep.subr.mxu0 0.0
    %80 = vmatpush1.msra.mxu0 %v43
    %81 = vmatprep.subr.mxu0 0.0
    %82 = vmatpush1.msra.mxu0 %v44
    %83 = vmatprep.subr.mxu0 0.0
    %84 = vmatpush1.msra.mxu0 %v45
    %85 = vmatprep.subr.mxu0 0.0
    %86 = vmatpush1.msra.mxu0 %v46
    %87 = vmatprep.subr.mxu0 0.0
    %88 = vmatpush1.msra.mxu0 %v47
    %89 = vmatprep.subr.mxu0 0.0
    %90 = vmatpush1.msra.mxu0 %v48
    %91 = vmatprep.subr.mxu0 0.0
    %92 = vmatpush1.msra.mxu0 %v49
    %93 = vmatprep.subr.mxu0 0.0
    %94 = vmatpush1.msra.mxu0 %v50
    %95 = vmatprep.subr.mxu0 0.0
    %96 = vmatpush1.msra.mxu0 %v51
    %97 = vmatprep.subr.mxu0 0.0
    %98 = vmatpush1.msra.mxu0 %v52
    %99 = vmatprep.subr.mxu0 0.0
    %100 = vmatpush1.msra.mxu0 %v53
    %101 = vmatprep.subr.mxu0 0.0
    %102 = vmatpush1.msra.mxu0 %v54
    %103 = vmatprep.subr.mxu0 0.0
    %104 = vmatpush1.msra.mxu0 %v55
    %105 = vmatprep.subr.mxu0 0.0
    %106 = vmatpush1.msra.mxu0 0.0
    %107 = vmatprep.subr.mxu0 0.0
    %108 = vmatpush1.msra.mxu0 0.0
    %109 = vmatprep.subr.mxu0 0.0
    %110 = vmatpush1.msra.mxu0 0.0
    %111 = vmatprep.subr.mxu0 0.0
    %112 = vmatpush1.msra.mxu0 0.0
    %113 = vmatprep.subr.mxu0 0.0
    %114 = vmatpush1.msra.mxu0 0.0
    %115 = vmatprep.subr.mxu0 0.0
    %116 = vmatpush1.msra.mxu0 0.0
    %117 = vmatprep.subr.mxu0 0.0
    %118 = vmatpush1.msra.mxu0 0.0
    %119 = vmatprep.subr.mxu0 0.0
    %120 = vmatpush1.msra.mxu0 0.0
    %121 = vmatprep.subr.mxu0 0.0
    %122 = vmatpush1.msra.mxu0 0.0
    %123 = vmatprep.subr.mxu0 0.0
    %124 = vmatpush1.msra.mxu0 0.0
    %125 = vmatprep.subr.mxu0 0.0
    %126 = vmatpush1.msra.mxu0 0.0
    %127 = vmatprep.subr.mxu0 0.0
    %128 = vmatpush1.msra.mxu0 0.0
    %129 = vmatprep.subr.mxu0 0.0
    %130 = vmatpush1.msra.mxu0 0.0
    %131 = vmatprep.subr.mxu0 0.0
    %132 = vmatpush1.msra.mxu0 0.0
    %133 = vmatprep.subr.mxu0 0.0
    %134 = vmatpush1.msra.mxu0 0.0
    %135 = vmatprep.subr.mxu0 0.0
    %136 = vmatpush1.msra.mxu0 0.0
    %137 = vmatprep.mubr.f32.mxu0 0.0
    %138 = vmatmul.mubr.f32.gmra.mrb[0].mxu0 %v71
    %v139 = vpop.f32.mrb[0].mxu0
    %v140 = vadd.f32 0.0, %v139
    %v141 = vpop.f32.mrb[0].mxu0
    %142 = vmatprep.mubr.f32.mxu0 0.0
    %143 = vmatmul.mubr.f32.gmra.mrb[0].mxu0 %v72
    %v144 = vpop.f32.mrb[0].mxu0
    %v145 = vadd.f32 0.0, %v144
    %v146 = vpop.f32.mrb[0].mxu0
    %147 = vdwg.mxu0
    %vm148 = vcmask 261120
    %v149 = vsel %vm148, %v140, -inf
    %150 = vmax.xlane.f32.xlu0 %v149
    %v151 = vpop.xlane.xlu0 %150
    %v152 = vsel %vm148, %v145, -inf
    %153 = vmax.xlane.f32.xlu0 %v152
    %v154 = vpop.xlane.xlu0 %153
    %v155 = vsub.f32 %v140, %v151
    %v156 = vsub.f32 %v145, %v154
    %v157 = vmul.f32 %v155, 1.442695
    %v158 = vpow.pop %v157
    %v159 = vmul.f32 %v156, 1.442695
    %v160 = vpow.pop %v159
    %v161 = vsel %vm148, %v158, 0.0
    %162 = vadd.xlane.f32.xlu0 %v161
    %v163 = vpop.xlane.xlu0 %162
    %v164 = vsel %vm148, %v160, 0.0
    %165 = vadd.xlane.f32.xlu0 %v164
    %v166 = vpop.xlane.xlu0 %165
    %v167 = vrcp.pop %v163
    %v168 = vrcp.pop %v166
    %v169 = vmul.f32 %v158, %v167
    %v170 = vmul.f32 %v160, %v168
    %171 = vxpose.xlu0.b32.start [1/16] %v170, 128
    %172 = vxpose.xlu0.b32.cont [2/16] 0.0, 128
    %173 = vxpose.xlu0.b32.cont [3/16] 0.0, 128
    %174 = vxpose.xlu0.b32.cont [4/16] 0.0, 128
    %175 = vxpose.xlu0.b32.cont [5/16] 0.0, 128
    %176 = vxpose.xlu0.b32.cont [6/16] 0.0, 128
    %177 = vxpose.xlu0.b32.cont [7/16] 0.0, 128
    %178 = vxpose.xlu0.b32.cont [8/16] 0.0, 128
    %179 = vxpose.xlu0.b32.cont [9/16] 0.0, 128
    %180 = vxpose.xlu0.b32.cont [10/16] 0.0, 128
    %181 = vxpose.xlu0.b32.cont [11/16] 0.0, 128
    %182 = vxpose.xlu0.b32.cont [12/16] 0.0, 128
    %183 = vxpose.xlu0.b32.cont [13/16] 0.0, 128
    %184 = vxpose.xlu0.b32.cont [14/16] 0.0, 128
    %185 = vxpose.xlu0.b32.cont [15/16] 0.0, 128
    %186 = vxpose.xlu0.b32.end [16/16] 0.0, 128
    %v187 = vpop.trf.xlu0
    %v188 = vpop.trf.xlu0
    %v189 = vpop.trf.xlu0
    %v190 = vpop.trf.xlu0
    %v191 = vpop.trf.xlu0
    %v192 = vpop.trf.xlu0
    %v193 = vpop.trf.xlu0
    %v194 = vpop.trf.xlu0
    %v195 = vpop.trf.xlu0
    %v196 = vpop.trf.xlu0
    %v197 = vpop.trf.xlu0
    %v198 = vpop.trf.xlu0
    %v199 = vpop.trf.xlu0
    %v200 = vpop.trf.xlu0
    %v201 = vpop.trf.xlu0
    %v202 = vpop.trf.xlu0
    %vm203 = vcmask 64512
    %v205 = vsel %vm203, %v187, 0
    %v208 = vsel %vm203, %v188, 0
    %v211 = vsel %vm203, %v189, 0
    %v214 = vsel %vm203, %v190, 0
    %216 = vmatprep.subr.mxu0 0.0
    %217 = vmatpush1.msra.mxu0 %v169
    %218 = vmatprep.subr.mxu0 0.0
    %219 = vmatpush1.msra.mxu0 0.0
    %220 = vmatprep.subr.mxu0 0.0
    %221 = vmatpush1.msra.mxu0 0.0
    %222 = vmatprep.subr.mxu0 0.0
    %223 = vmatpush1.msra.mxu0 0.0
    %224 = vmatprep.subr.mxu0 0.0
    %225 = vmatpush1.msra.mxu0 0.0
    %226 = vmatprep.subr.mxu0 0.0
    %227 = vmatpush1.msra.mxu0 0.0
    %228 = vmatprep.subr.mxu0 0.0
    %229 = vmatpush1.msra.mxu0 0.0
    %230 = vmatprep.subr.mxu0 0.0
    %231 = vmatpush1.msra.mxu0 0.0
    %232 = vmatprep.subr.mxu0 0.0
    %233 = vmatpush1.msra.mxu0 0.0
    %234 = vmatprep.subr.mxu0 0.0
    %235 = vmatpush1.msra.mxu0 0.0
    %236 = vmatprep.subr.mxu0 0.0
    %237 = vmatpush1.msra.mxu0 0.0
    %238 = vmatprep.subr.mxu0 0.0
    %239 = vmatpush1.msra.mxu0 0.0
    %240 = vmatprep.subr.mxu0 0.0
    %241 = vmatpush1.msra.mxu0 0.0
    %242 = vmatprep.subr.mxu0 0.0
    %243 = vmatpush1.msra.mxu0 0.0
    %244 = vmatprep.subr.mxu0 0.0
    %245 = vmatpush1.msra.mxu0 0.0
    %246 = vmatprep.subr.mxu0 0.0
    %247 = vmatpush1.msra.mxu0 0.0
    %248 = vmatprep.subr.mxu0 0.0
    %249 = vmatpush1.msra.mxu0 0.0
    %250 = vmatprep.subr.mxu0 0.0
    %251 = vmatpush1.msra.mxu0 0.0
    %252 = vmatprep.subr.mxu0 0.0
    %253 = vmatpush1.msra.mxu0 0.0
    %254 = vmatprep.subr.mxu0 0.0
    %255 = vmatpush1.msra.mxu0 0.0
    %256 = vmatprep.subr.mxu0 0.0
    %257 = vmatpush1.msra.mxu0 0.0
    %258 = vmatprep.subr.mxu0 0.0
    %259 = vmatpush1.msra.mxu0 0.0
    %260 = vmatprep.subr.mxu0 0.0
    %261 = vmatpush1.msra.mxu0 0.0
    %262 = vmatprep.subr.mxu0 0.0
    %263 = vmatpush1.msra.mxu0 0.0
    %264 = vmatprep.subr.mxu0 0.0
    %265 = vmatpush1.msra.mxu0 0.0
    %266 = vmatprep.subr.mxu0 0.0
    %267 = vmatpush1.msra.mxu0 0.0
    %268 = vmatprep.subr.mxu0 0.0
    %269 = vmatpush1.msra.mxu0 0.0
    %270 = vmatprep.subr.mxu0 0.0
    %271 = vmatpush1.msra.mxu0 0.0
    %272 = vmatprep.subr.mxu0 0.0
    %273 = vmatpush1.msra.mxu0 0.0
    %274 = vmatprep.subr.mxu0 0.0
    %275 = vmatpush1.msra.mxu0 0.0
    %276 = vmatprep.subr.mxu0 0.0
    %277 = vmatpush1.msra.mxu0 0.0
    %278 = vmatprep.subr.mxu0 0.0
    %279 = vmatpush1.msra.mxu0 0.0
    %280 = vmatprep.mubr.f32.mxu0 0.0
    %281 = vmatmul.mubr.f32.gmra.mrb[0].mxu0 %v205
    %v282 = vpop.f32.mrb[0].mxu0
    %v283 = vadd.f32 0.0, %v282
    %v284 = vpop.f32.mrb[0].mxu0
    %285 = vmatprep.mubr.f32.mxu0 0.0
    %286 = vmatmul.mubr.f32.gmra.mrb[0].mxu0 %v208
    %v287 = vpop.f32.mrb[0].mxu0
    %v288 = vadd.f32 0.0, %v287
    %v289 = vpop.f32.mrb[0].mxu0
    %290 = vmatprep.mubr.f32.mxu0 0.0
    %291 = vmatmul.mubr.f32.gmra.mrb[0].mxu0 %v211
    %v292 = vpop.f32.mrb[0].mxu0
    %v293 = vadd.f32 0.0, %v292
    %v294 = vpop.f32.mrb[0].mxu0
    %295 = vmatprep.mubr.f32.mxu0 0.0
    %296 = vmatmul.mubr.f32.gmra.mrb[0].mxu0 %v214
    %v297 = vpop.f32.mrb[0].mxu0
    %v298 = vadd.f32 0.0, %v297
    %v299 = vpop.f32.mrb[0].mxu0
    %300 = vdwg.mxu0
    %301 = vxpose.xlu0.b32.start [1/16] %v169, 128
    %302 = vxpose.xlu0.b32.cont [2/16] 0.0, 128
    %303 = vxpose.xlu0.b32.cont [3/16] 0.0, 128
    %304 = vxpose.xlu0.b32.cont [4/16] 0.0, 128
    %305 = vxpose.xlu0.b32.cont [5/16] 0.0, 128
    %306 = vxpose.xlu0.b32.cont [6/16] 0.0, 128
    %307 = vxpose.xlu0.b32.cont [7/16] 0.0, 128
    %308 = vxpose.xlu0.b32.cont [8/16] 0.0, 128
    %309 = vxpose.xlu0.b32.cont [9/16] 0.0, 128
    %310 = vxpose.xlu0.b32.cont [10/16] 0.0, 128
    %311 = vxpose.xlu0.b32.cont [11/16] 0.0, 128
    %312 = vxpose.xlu0.b32.cont [12/16] 0.0, 128
    %313 = vxpose.xlu0.b32.cont [13/16] 0.0, 128
    %314 = vxpose.xlu0.b32.cont [14/16] 0.0, 128
    %315 = vxpose.xlu0.b32.cont [15/16] 0.0, 128
    %316 = vxpose.xlu0.b32.end [16/16] 0.0, 128
    %v317 = vpop.trf.xlu0
    %v318 = vpop.trf.xlu0
    %v319 = vpop.trf.xlu0
    %v320 = vpop.trf.xlu0
    %v321 = vpop.trf.xlu0
    %v322 = vpop.trf.xlu0
    %v323 = vpop.trf.xlu0
    %v324 = vpop.trf.xlu0
    %v325 = vpop.trf.xlu0
    %v326 = vpop.trf.xlu0
    %v327 = vpop.trf.xlu0
    %v328 = vpop.trf.xlu0
    %v329 = vpop.trf.xlu0
    %v330 = vpop.trf.xlu0
    %v331 = vpop.trf.xlu0
    %v332 = vpop.trf.xlu0
    %v334 = vsel %vm203, %v317, 0
    %v337 = vsel %vm203, %v318, 0
    %v340 = vsel %vm203, %v319, 0
    %v343 = vsel %vm203, %v320, 0
    %345 = vmatprep.subr.mxu0 0.0
    %346 = vmatpush1.msra.mxu0 %v170
    %347 = vmatprep.subr.mxu0 0.0
    %348 = vmatpush1.msra.mxu0 0.0
    %349 = vmatprep.subr.mxu0 0.0
    %350 = vmatpush1.msra.mxu0 0.0
    %351 = vmatprep.subr.mxu0 0.0
    %352 = vmatpush1.msra.mxu0 0.0
    %353 = vmatprep.subr.mxu0 0.0
    %354 = vmatpush1.msra.mxu0 0.0
    %355 = vmatprep.subr.mxu0 0.0
    %356 = vmatpush1.msra.mxu0 0.0
    %357 = vmatprep.subr.mxu0 0.0
    %358 = vmatpush1.msra.mxu0 0.0
    %359 = vmatprep.subr.mxu0 0.0
    %360 = vmatpush1.msra.mxu0 0.0
    %361 = vmatprep.subr.mxu0 0.0
    %362 = vmatpush1.msra.mxu0 0.0
    %363 = vmatprep.subr.mxu0 0.0
    %364 = vmatpush1.msra.mxu0 0.0
    %365 = vmatprep.subr.mxu0 0.0
    %366 = vmatpush1.msra.mxu0 0.0
    %367 = vmatprep.subr.mxu0 0.0
    %368 = vmatpush1.msra.mxu0 0.0
    %369 = vmatprep.subr.mxu0 0.0
    %370 = vmatpush1.msra.mxu0 0.0
    %371 = vmatprep.subr.mxu0 0.0
    %372 = vmatpush1.msra.mxu0 0.0
    %373 = vmatprep.subr.mxu0 0.0
    %374 = vmatpush1.msra.mxu0 0.0
    %375 = vmatprep.subr.mxu0 0.0
    %376 = vmatpush1.msra.mxu0 0.0
    %377 = vmatprep.subr.mxu0 0.0
    %378 = vmatpush1.msra.mxu0 0.0
    %379 = vmatprep.subr.mxu0 0.0
    %380 = vmatpush1.msra.mxu0 0.0
    %381 = vmatprep.subr.mxu0 0.0
    %382 = vmatpush1.msra.mxu0 0.0
    %383 = vmatprep.subr.mxu0 0.0
    %384 = vmatpush1.msra.mxu0 0.0
    %385 = vmatprep.subr.mxu0 0.0
    %386 = vmatpush1.msra.mxu0 0.0
    %387 = vmatprep.subr.mxu0 0.0
    %388 = vmatpush1.msra.mxu0 0.0
    %389 = vmatprep.subr.mxu0 0.0
    %390 = vmatpush1.msra.mxu0 0.0
    %391 = vmatprep.subr.mxu0 0.0
    %392 = vmatpush1.msra.mxu0 0.0
    %393 = vmatprep.subr.mxu0 0.0
    %394 = vmatpush1.msra.mxu0 0.0
    %395 = vmatprep.subr.mxu0 0.0
    %396 = vmatpush1.msra.mxu0 0.0
    %397 = vmatprep.subr.mxu0 0.0
    %398 = vmatpush1.msra.mxu0 0.0
    %399 = vmatprep.subr.mxu0 0.0
    %400 = vmatpush1.msra.mxu0 0.0
    %401 = vmatprep.subr.mxu0 0.0
    %402 = vmatpush1.msra.mxu0 0.0
    %403 = vmatprep.subr.mxu0 0.0
    %404 = vmatpush1.msra.mxu0 0.0
    %405 = vmatprep.subr.mxu0 0.0
    %406 = vmatpush1.msra.mxu0 0.0
    %407 = vmatprep.subr.mxu0 0.0
    %408 = vmatpush1.msra.mxu0 0.0
    %409 = vmatprep.mubr.f32.mxu0 0.0
    %410 = vmatmul.mubr.f32.gmra.mrb[0].mxu0 %v334
    %v411 = vpop.f32.mrb[0].mxu0
    %v412 = vadd.f32 %v283, %v411
    %v413 = vpop.f32.mrb[0].mxu0
    %414 = vmatprep.mubr.f32.mxu0 0.0
    %415 = vmatmul.mubr.f32.gmra.mrb[0].mxu0 %v337
    %v416 = vpop.f32.mrb[0].mxu0
    %v417 = vadd.f32 %v288, %v416
    %v418 = vpop.f32.mrb[0].mxu0
    %419 = vmatprep.mubr.f32.mxu0 0.0
    %420 = vmatmul.mubr.f32.gmra.mrb[0].mxu0 %v340
    %v421 = vpop.f32.mrb[0].mxu0
    %v422 = vadd.f32 %v293, %v421
    %v423 = vpop.f32.mrb[0].mxu0
    %424 = vmatprep.mubr.f32.mxu0 0.0
    %425 = vmatmul.mubr.f32.gmra.mrb[0].mxu0 %v343
    %v426 = vpop.f32.mrb[0].mxu0
    %v427 = vadd.f32 %v298, %v426
    %v428 = vpop.f32.mrb[0].mxu0
    %429 = vdwg.mxu0
    %v430 = vmul.f32 %v412, 0.5
    %v431 = vmul.f32 %v417, 0.5
    %v432 = vmul.f32 %v422, 0.5
    %v433 = vmul.f32 %v427, 0.5
    %v434 = vsel %vm148, %v430, 0.0
    %435 = vadd.xlane.f32.xlu0 %v434
    %v436 = vpop.xlane.xlu0 %435
    %v437 = vsel %vm148, %v431, 0.0
    %438 = vadd.xlane.f32.xlu0 %v437
    %v439 = vpop.xlane.xlu0 %438
    %v440 = vsel %vm148, %v432, 0.0
    %441 = vadd.xlane.f32.xlu0 %v440
    %v442 = vpop.xlane.xlu0 %441
    %v443 = vsel %vm148, %v433, 0.0
    %444 = vadd.xlane.f32.xlu0 %v443
    %v445 = vpop.xlane.xlu0 %444
    %v446 = vadd.f32 %v436, %v439
    %v447 = vadd.f32 %v446, %v442
    %v448 = vadd.f32 %v447, %v445
    %v449 = vrot.slane %v448, 4
    %v450 = vadd.f32 %v448, %v449
    %v451 = vrot.slane %v450, 2
    %v452 = vadd.f32 %v450, %v451
    %v453 = vrot.slane %v452, 1
    %v454 = vadd.f32 %v452, %v453
    %v455 = vrcp.pop %v454
    %v456 = vmul.f32 %v430, %v455
    %v457 = vmul.f32 %v431, %v455
    %v458 = vmul.f32 %v432, %v455
    %v459 = vmul.f32 %v433, %v455
    %v460 = vsel %vm148, %v456, 0.0
    %461 = vadd.xlane.f32.xlu0 %v460
    %v462 = vpop.xlane.xlu0 %461
    %v463 = vsel %vm148, %v457, 0.0
    %464 = vadd.xlane.f32.xlu0 %v463
    %v465 = vpop.xlane.xlu0 %464
    %v466 = vsel %vm148, %v458, 0.0
    %467 = vadd.xlane.f32.xlu0 %v466
    %v468 = vpop.xlane.xlu0 %467
    %v469 = vsel %vm148, %v459, 0.0
    %470 = vadd.xlane.f32.xlu0 %v469
    %v471 = vpop.xlane.xlu0 %470
    %v472 = vmax.f32 %v456, 2.220446e-16
    %v473 = vmax.f32 %v457, 2.220446e-16
    %v474 = vmax.f32 %v458, 2.220446e-16
    %v475 = vmax.f32 %v459, 2.220446e-16
    %v476 = vmax.f32 %v462, 2.220446e-16
    %v477 = vmax.f32 %v465, 2.220446e-16
    %v478 = vmax.f32 %v468, 2.220446e-16
    %v479 = vmax.f32 %v471, 2.220446e-16
    %v480 = vlog2.pop %v472
    %v481 = vmul.f32 %v480, 0.6931472
    %v482 = vlog2.pop %v473
    %v483 = vmul.f32 %v482, 0.6931472
    %v484 = vlog2.pop %v474
    %v485 = vmul.f32 %v484, 0.6931472
    %v486 = vlog2.pop %v475
    %v487 = vmul.f32 %v486, 0.6931472
    %v488 = vmul.f32 %v472, %v481
    %v489 = vmul.f32 %v473, %v483
    %v490 = vmul.f32 %v474, %v485
    %v491 = vmul.f32 %v475, %v487
    %v492 = vsel %vm148, %v488, 0.0
    %493 = vadd.xlane.f32.xlu0 %v492
    %v494 = vpop.xlane.xlu0 %493
    %v495 = vsel %vm148, %v489, 0.0
    %496 = vadd.xlane.f32.xlu0 %v495
    %v497 = vpop.xlane.xlu0 %496
    %v498 = vsel %vm148, %v490, 0.0
    %499 = vadd.xlane.f32.xlu0 %v498
    %v500 = vpop.xlane.xlu0 %499
    %v501 = vsel %vm148, %v491, 0.0
    %502 = vadd.xlane.f32.xlu0 %v501
    %v503 = vpop.xlane.xlu0 %502
    %v504 = vadd.f32 %v494, %v497
    %v505 = vadd.f32 %v504, %v500
    %v506 = vadd.f32 %v505, %v503
    %v507 = vrot.slane %v506, 4
    %v508 = vadd.f32 %v506, %v507
    %v509 = vrot.slane %v508, 2
    %v510 = vadd.f32 %v508, %v509
    %v511 = vrot.slane %v510, 1
    %v512 = vadd.f32 %v510, %v511
    %v513 = vlog2.pop %v476
    %v514 = vmul.f32 %v513, 0.6931472
    %v515 = vlog2.pop %v477
    %v516 = vmul.f32 %v515, 0.6931472
    %v517 = vlog2.pop %v478
    %v518 = vmul.f32 %v517, 0.6931472
    %v519 = vlog2.pop %v479
    %v520 = vmul.f32 %v519, 0.6931472
    %v521 = vmul.f32 %v476, %v514
    %v522 = vmul.f32 %v477, %v516
    %v523 = vmul.f32 %v478, %v518
    %v524 = vmul.f32 %v479, %v520
    %v525 = vadd.f32 %v521, %v522
    %v526 = vadd.f32 %v525, %v523
    %v527 = vadd.f32 %v526, %v524
    %v528 = vrot.slane %v527, 4
    %v529 = vadd.f32 %v527, %v528
    %v530 = vrot.slane %v529, 2
    %v531 = vadd.f32 %v529, %v530
    %v532 = vrot.slane %v531, 1
    %v533 = vadd.f32 %v531, %v532
    %v534 = vsub.f32 0.0, %v512
    %v535 = vmul.f32 %v533, 20.0
    %v536 = vadd.f32 %v534, %v535
    %vm537 = vcmask 0
    %538 = vst.msk [vmem:[#allocation7] sm:$0x1] %vm537, %v536
    // Predicated region
    $region18: #{multi_view_contrastive_loss.1} parent=1 // pred_check
      _
    $region19: #{multi_view_contrastive_loss.1} parent=1 // pred_check_branch
      %540 = sbr.rel (0) target = $region21
    $region20: #{multi_view_contrastive_loss.1} parent=1 // pred_region
      %s542 = ssub.s32 16, 16
      %543 = vsyncadd [#allocation4], %s542
      %s545 = sshll.u32 [#allocation7], 4
      %s546 = int_to_ptr.vmem [resolvable:$true] %s545
      %548 = dma.vmem_to_hbm [thread:$0]  %s546, 16, %s2, [#allocation4]
    $region21: #{multi_view_contrastive_loss.1} parent=1 // pred_fallthru
      _
    // Predicated region
    $region22: #{multi_view_contrastive_loss.1} parent=1 // pred_check
      _
    $region23: #{multi_view_contrastive_loss.1} parent=1 // pred_check_branch
      %550 = sbr.rel (0) target = $region25
    $region24: #{multi_view_contrastive_loss.1} parent=1 // pred_region
      %551 = dma.done [#allocation4], 16
    $region25: #{multi_view_contrastive_loss.1} parent=1 // pred_fallthru
      _
    %552 = vsyncpa [#allocation3], 1
    %553 = vsyncpa [#allocation6], 1
    %554 = vsyncpa [#allocation4], 1

</llo_original>
